<compile_context>
chip_gen: v5e
topology: v5e:2x2
jax: 0.10.0
libtpu: 0.0.40
codegen_flags: <defaults>
</compile_context>

<pallas_src>
import functools
from math import ceil

import numpy as np
import jax
import jax.numpy as jnp
from jax.experimental import pallas as pl
from jax.experimental.pallas import tpu as pltpu

# ----------------------------- module "config" ------------------------------ #
NUM_CLASSES = 4
ANCHORS = [[10, 13, 16, 30, 33, 23],
           [30, 61, 62, 45, 119, 119][:6],
           [116, 90, 156, 198, 373, 326]]
ANCHORS[1] = [30, 61, 62, 45, 59, 119]
NL = len(ANCHORS)
NA = len(ANCHORS[0]) // 2
G = 1.0
THRESH = 4.0
BALANCE = [4.0, 1.0, 0.4]
CP, CN = 1.0, 0.0                      # smooth_BCE(eps=0.0)
EPS = 1e-7

OBJ_LANE = 512              # lane width of the packed objectness map (multiple of 128)
OBJ_PAD = -200.0            # BCEWithLogits(x, 0) == 0 exactly for x <= ~-104 in f32
MATCHED_TILE_ROWS = 8       # 8 sublane-rows x 128 lanes = 1024 matched columns / step
MATCHED_MIN_COLS = 1024     # power-of-two column buckets (>= 1024) -> few recompiles


def _round_up(x, m):
    return ((x + m - 1) // m) * m


def _obj_max_tile_rows():
    """~1 MiB tiles on v7x (64 MiB VMEM), ~2 MiB tiles on v5e/v6e (128 MiB VMEM)."""
    try:
        if pltpu.get_tpu_info().vmem_capacity_bytes >= (96 << 20):
            return 1024
    except Exception:
        pass
    return 512


# --------------------------- host-side build_targets ------------------------ #
def build_targets_np(targets, grids, image_size, anchors, g=1.0, thresh=4.0):
    """Faithful NumPy port of YoloLossV7.build_targets (dynamic shapes -> host)."""
    # TODO(synk): the per-image Python loop + np.unique(axis=0) mirrors the torch
    # reference exactly; further host-side vectorization is possible but must keep
    # the per-image sorted-unique semantics.
    tcls, tbox, indices, anch = [], [], [], []
    offs = np.array([[0, 0], [1, 0], [0, 1], [-1, 0], [0, -1]], np.float32) * g
    ox, oy = offs[:, 0:1], offs[:, 1:2]                       # (5,1) each
    gain = np.ones(6, np.float32)
    for i in range(len(grids)):
        ng = np.asarray(grids[i], np.float32)                 # (H, W)
        stride = image_size / ng                              # (sH, sW)
        anchor = anchors[i] / stride[[1, 0]]                  # (na, 2) in grid units
        na = anchor.shape[0]
        gain[2:] = (1.0 / stride)[[1, 0, 1, 0]]
        t = np.zeros((0, 9), np.float32)
        for tb0 in targets * gain:                            # tb0: (M, 6)
            nb, cls, cx, cy, gw, gh = [tb0[:, k] for k in range(6)]
            identity = np.zeros_like(ox)                      # (5,1)
            gi = np.trunc(cx - ox)                            # .long() truncates toward 0
            gj = np.trunc(cy - oy)
            tb = np.stack([nb - identity, cls - identity, cx - identity, cy - identity,
                           gi, gj, gw - identity, gh - identity], -1)      # (5, M, 8)
            jmask = ((0 <= tb[..., 4:6]) & (tb[..., 4:6] < ng[[1, 0]])).all(-1)
            tb = tb[jmask]                                    # (K, 8)
            tb = np.unique(tb, axis=0)                        # sorted unique rows
            K = tb.shape[0]
            ai = np.repeat(np.arange(na, dtype=np.float32).reshape(na, 1), K, axis=1)
            tb = np.concatenate([np.tile(tb[None], (na, 1, 1)), ai[:, :, None]], 2)
            r = tb[..., 6:8] / anchor[:, None]
            with np.errstate(divide="ignore"):
                jmask = np.maximum(r, 1.0 / r).max(axis=2) < thresh
            tb = tb[jmask]
            t = np.concatenate([t, tb.astype(np.float32)], 0)
        b = t[:, 0].astype(np.int64)
        c = t[:, 1].astype(np.int64)
        gxy = t[:, 2:4]
        gwh = t[:, 6:8]
        gij = t[:, 4:6].astype(np.int64)
        gi_, gj_ = gij[:, 0], gij[:, 1]
        a = t[:, 8].astype(np.int64)
        indices.append((b, a, gj_, gi_))
        tbox.append(np.concatenate([gxy - gij.astype(np.float32), gwh], 1))
        anch.append(anchor[a])
        tcls.append(c)
    return tcls, tbox, indices, anch


def _last_occurrence_mask(keys):
    """Mark the LAST occurrence of each duplicate (b,a,gj,gi) row (last-write-wins
    semantics of `tobj[b,a,gj,gi] = iou`), vectorized via np.unique on reversed keys."""
    n = keys.shape[0]
    mask = np.zeros(n, bool)
    if n == 0:
        return mask
    rev = np.ascontiguousarray(keys[::-1])
    _, first_in_rev = np.unique(rev, axis=0, return_index=True)
    mask[n - 1 - first_in_rev] = True
    return mask


# ------------------------------- Pallas kernels ------------------------------ #
def _atan_pos(x):
    # atan(x) for x >= 0, Cephes-style reduction + degree-4 poly (float32 accurate).
    # TODO(synk): polynomial atan since lax.atan lowering on Mosaic is not relied upon.
    t3p8 = 2.414213562373095
    tp8 = 0.4142135623730951
    inv_x = pl.reciprocal(jnp.maximum(x, 1e-30), approx=True)
    inv_xp1 = pl.reciprocal(x + 1.0, approx=True)
    xr = jnp.where(x > t3p8, -inv_x,
                   jnp.where(x > tp8, (x - 1.0) * inv_xp1, x))
    y0 = jnp.where(x > t3p8, np.float32(np.pi / 2),
                   jnp.where(x > tp8, np.float32(np.pi / 4), 0.0))
    z = xr * xr
    p = (((8.05374449538e-2 * z - 1.38776856032e-1) * z + 1.99777106478e-1) * z
         - 3.33329491539e-1) * z * xr + xr
    return y0 + p


def _bce_with_logits(x, t):
    # Numerically-stable BCEWithLogits (pos_weight=1), elementwise.
    return jnp.maximum(x, 0.0) - x * t + jnp.log(1.0 + jnp.exp(-jnp.abs(x)))


def matched_loss_kernel(ps_ref, tbox_ref, anch_ref, cls0_ref, w_ref, out_ref, *, nc):
    """Fused box (CIoU) + cls + objectness-correction loss over one tile of matched
    columns, laid out channels-first and sublane/lane-dense:

      ps:   (5+nc, TR, 128) f32 gathered prediction logits
      tbox: (4,    TR, 128) f32 target boxes (cx, cy, w, h) in grid units
      anch: (2,    TR, 128) f32 matched anchors (grid units)
      cls0: (1,    TR, 128) i32 zero-based class index (torch wrap applied on host)
      w:    (3,    TR, 128) f32 per-column weights:
              [0] 1/nb_i (box mean), [1] 1/(nb_i*nc) (cls mean, 0 if nc==1),
              [2] balance_i/N_i * last-occurrence mask (obj correction).
            Padded columns carry weight 0 and benign (finite) values.

    out:  (1, 8, 128) lane-dense partials; (0,0,0)=lbox, (0,1,0)=lcls, (0,2,0)=lobjc.
    """
    scale_xy = 1.0 + ceil(G / 0.5)                      # == 3 for g = 1.0 (as in module)
    b1x = jax.nn.sigmoid(ps_ref[0]) * scale_xy - G
    b1y = jax.nn.sigmoid(ps_ref[1]) * scale_xy - G
    w1 = (jax.nn.sigmoid(ps_ref[2]) * 2.0) ** 2 * anch_ref[0]
    h1 = (jax.nn.sigmoid(ps_ref[3]) * 2.0) ** 2 * anch_ref[1]
    b2x, b2y = tbox_ref[0], tbox_ref[1]
    w2, h2 = tbox_ref[2], tbox_ref[3]

    b1x1, b1x2 = b1x - w1 * 0.5, b1x + w1 * 0.5
    b1y1, b1y2 = b1y - h1 * 0.5, b1y + h1 * 0.5
    b2x1, b2x2 = b2x - w2 * 0.5, b2x + w2 * 0.5
    b2y1, b2y2 = b2y - h2 * 0.5, b2y + h2 * 0.5

    iw = jnp.maximum(jnp.minimum(b1x2, b2x2) - jnp.maximum(b1x1, b2x1), 0.0)
    ih = jnp.maximum(jnp.minimum(b1y2, b2y2) - jnp.maximum(b1y1, b2y1), 0.0)
    inter = iw * ih
    union = w1 * h1 + w2 * h2 - inter + EPS
    iou = inter * pl.reciprocal(union, approx=True)

    cw = jnp.maximum(b1x2, b2x2) - jnp.minimum(b1x1, b2x1)
    ch = jnp.maximum(b1y2, b2y2) - jnp.minimum(b1y1, b2y1)
    c2 = cw * cw + ch * ch + EPS
    rho2 = (b2x - b1x) ** 2 + (b2y - b1y) ** 2
    d = (_atan_pos(w2 * pl.reciprocal(jnp.maximum(h2, EPS), approx=True))
         - _atan_pos(w1 * pl.reciprocal(jnp.maximum(h1, EPS), approx=True)))
    v = (4.0 / (np.pi ** 2)) * d * d
    # exact denominator is >= EPS; the clamp only guards approx-recip rounding.
    alpha = v * pl.reciprocal(jnp.maximum(v - iou + (1.0 + EPS), EPS), approx=True)
    ciou = iou - (rho2 * pl.reciprocal(c2, approx=True) + v * alpha)      # (TR, 128)

    wbox, wcls, wobj = w_ref[0], w_ref[1], w_ref[2]
    lbox_p = jnp.sum(wbox * (1.0 - ciou))
    lobjc_p = jnp.sum(wobj * ps_ref[4] * jnp.maximum(ciou, 0.0))

    # cls loss: BCEWithLogits vs one-hot(tcls-1), normalization baked into w[1].
    cls_logits = ps_ref[pl.ds(5, nc), :, :]                               # (nc, TR, 128)
    chan = jax.lax.broadcasted_iota(jnp.int32, cls_logits.shape, 0)
    tcls_t = jnp.where(chan == cls0_ref[0][None, :, :], CP, CN)
    lcls_p = jnp.sum(wcls[None, :, :] * _bce_with_logits(cls_logits, tcls_t))

    sub = jax.lax.broadcasted_iota(jnp.int32, (1, 8, 128), 1)
    lane = jax.lax.broadcasted_iota(jnp.int32, (1, 8, 128), 2)
    vals = jnp.where(sub == 0, lbox_p,
                     jnp.where(sub == 1, lcls_p,
                               jnp.where(sub == 2, lobjc_p, 0.0)))
    out_ref[...] = jnp.where(lane == 0, vals, 0.0)


def obj_bce_kernel(x_ref, w_ref, out_ref):
    """Weighted sum of BCEWithLogits(x, 0) over one (TR, LANE) tile of the packed
    objectness map.  Pad elements are -200 so BCE(x,0)==0 with no masking; the
    per-row weight (balance_i / N_i) is applied after the lane reduction."""
    x = x_ref[...]                                             # (TR, LANE)
    bce0 = jnp.maximum(x, 0.0) + jnp.log(1.0 + jnp.exp(-jnp.abs(x)))
    # TODO(synk): on v6e/v7x bf16 exp/log would roughly double EUP throughput here.
    row_sums = jnp.sum(bce0, axis=1, keepdims=True)            # (TR, 1)
    partial = jnp.sum(w_ref[...] * row_sums)
    sub = jax.lax.broadcasted_iota(jnp.int32, (1, 8, 128), 1)
    lane = jax.lax.broadcasted_iota(jnp.int32, (1, 8, 128), 2)
    out_ref[...] = jnp.where((sub == 0) & (lane == 0), partial, 0.0)


# ------------------------------ pallas_call wrappers -------------------------- #
def matched_loss_call(ps3, tbox3, anch3, cls03, w3, nc):
    no, R, _ = ps3.shape
    tr = min(R, MATCHED_TILE_ROWS)                  # both powers of two -> divides R
    num_tiles = R // tr
    kernel = functools.partial(matched_loss_kernel, nc=nc)
    partials = pl.pallas_call(
        kernel,
        out_shape=jax.ShapeDtypeStruct((num_tiles, 8, 128), jnp.float32),
        grid=(num_tiles,),
        in_specs=[pl.BlockSpec((no, tr, 128), lambda i: (0, i, 0)),
                  pl.BlockSpec((4, tr, 128), lambda i: (0, i, 0)),
                  pl.BlockSpec((2, tr, 128), lambda i: (0, i, 0)),
                  pl.BlockSpec((1, tr, 128), lambda i: (0, i, 0)),
                  pl.BlockSpec((3, tr, 128), lambda i: (0, i, 0))],
        out_specs=pl.BlockSpec((1, 8, 128), lambda i: (i, 0, 0)),
        compiler_params=pltpu.CompilerParams(dimension_semantics=("parallel",)),
    )(ps3, tbox3, anch3, cls03, w3)
    sums = jnp.sum(partials, axis=(0, 2))           # exact: non-(.,0..2,0) entries are 0
    return sums[0], sums[1], sums[2]


def obj_bce_call(x2d, w_col, tile_rows):
    r_pad, lane_w = x2d.shape
    num_tiles = r_pad // tile_rows
    partials = pl.pallas_call(
        obj_bce_kernel,
        out_shape=jax.ShapeDtypeStruct((num_tiles, 8, 128), jnp.float32),
        grid=(num_tiles,),
        in_specs=[pl.BlockSpec((tile_rows, lane_w), lambda i: (i, 0)),
                  pl.BlockSpec((tile_rows, 1), lambda i: (i, 0))],
        out_specs=pl.BlockSpec((1, 8, 128), lambda i: (i, 0, 0)),
        compiler_params=pltpu.CompilerParams(dimension_semantics=("parallel",)),
    )(x2d, w_col)
    return jnp.sum(partials)                        # exact: only (i,0,0) is nonzero


# ----------------------------- layout packing glue ---------------------------- #
def _pack_obj_logits(preds):
    """Pack all scales' raw objectness logits into one lane-dense (rows, 512) slab.
    Tail lanes / rows are padded with -200 (=> BCE(x,0)==0, no masking needed); the
    per-row weight balance_i/N_i sideband is 0 on fully-padded rows."""
    segs, w_rows = [], []
    for i, pi in enumerate(preds):
        n = int(np.prod(pi.shape[:-1]))
        rows = -(-n // OBJ_LANE)
        flat = pi[..., 4].reshape(-1)
        flat = jnp.pad(flat, (0, rows * OBJ_LANE - n), constant_values=OBJ_PAD)
        segs.append(flat.reshape(rows, OBJ_LANE))
        w_rows.extend([BALANCE[i] / float(n)] * rows)
    x2d = jnp.concatenate(segs, axis=0)
    r = x2d.shape[0]
    max_tile_rows = _obj_max_tile_rows()
    n_tiles = -(-r // max_tile_rows)
    tile_rows = _round_up(-(-r // n_tiles), 8)      # near-even tiles, <= max_tile_rows
    r_pad = tile_rows * n_tiles
    if r_pad > r:
        x2d = jnp.pad(x2d, ((0, r_pad - r), (0, 0)), constant_values=OBJ_PAD)
    w_col = np.zeros((r_pad, 1), np.float32)
    w_col[:r, 0] = w_rows
    return x2d, jnp.asarray(w_col), tile_rows


def _pack_matched(preds, tcls_l, tbox_l, idx_l, anch_l, nc):
    """Gather matched predictions for all scales, transpose to channels-first and
    fold columns into (C, Np/128, 128) slabs; Np padded to power-of-two buckets
    (>= 1024) so recompiles are bounded and rows are a multiple of 8 sublanes."""
    ps_cols, tbox_cols, anch_cols, cls0_cols = [], [], [], []
    wbox_cols, wcls_cols, wobj_cols = [], [], []
    for i, pi in enumerate(preds):
        b, a, gj, gi = idx_l[i]
        nb = int(len(b))
        if nb == 0:
            continue
        B_, A_, H_, W_, _ = pi.shape
        # gather of matched predictions (glue, data-dependent indexing)
        ps = pi[jnp.asarray(b), jnp.asarray(a), jnp.asarray(gj), jnp.asarray(gi)]
        ps_cols.append(ps.T)                                        # (NO, nb)
        tbox_cols.append(np.asarray(tbox_l[i], np.float32).T)       # (4, nb)
        anch_cols.append(np.asarray(anch_l[i], np.float32).T)       # (2, nb)
        # torch `t[range(nb), tcls-1]`: negative-index wrap for class id 0.
        cls0_cols.append(((tcls_l[i] - 1) % nc).astype(np.int32)[None, :])
        wbox_cols.append(np.full((1, nb), 1.0 / nb, np.float32))
        wcls_cols.append(np.full((1, nb),
                                 (1.0 / (nb * nc)) if nc > 1 else 0.0, np.float32))
        last = _last_occurrence_mask(np.stack([b, a, gj, gi], 1))
        n_i = B_ * A_ * H_ * W_
        wobj_cols.append((last.astype(np.float32) * (BALANCE[i] / n_i))[None, :])
    if not ps_cols:
        return None
    np_total = int(sum(c.shape[1] for c in ps_cols))
    np_pad = max(MATCHED_MIN_COLS, 1 << int(np.ceil(np.log2(np_total))))
    R = np_pad // 128
    no = preds[0].shape[-1]

    ps_all = jnp.concatenate(ps_cols, axis=1)
    ps3 = (jnp.zeros((no, np_pad), jnp.float32).at[:, :np_total].set(ps_all)
           .reshape(no, R, 128))

    # Benign-pad invariant: padded columns MUST carry weight 0 AND finite values
    # (ps=0, tbox w=h=1, anch=1) so the CIoU chain never produces NaN*0.
    tbox_pad = np.zeros((4, np_pad), np.float32)
    tbox_pad[2:, :] = 1.0
    tbox_pad[:, :np_total] = np.concatenate(tbox_cols, axis=1)
    anch_pad = np.ones((2, np_pad), np.float32)
    anch_pad[:, :np_total] = np.concatenate(anch_cols, axis=1)
    cls0_pad = np.zeros((1, np_pad), np.int32)
    cls0_pad[:, :np_total] = np.concatenate(cls0_cols, axis=1)
    w_pad = np.zeros((3, np_pad), np.float32)
    w_pad[0, :np_total] = np.concatenate(wbox_cols, axis=1)[0]
    w_pad[1, :np_total] = np.concatenate(wcls_cols, axis=1)[0]
    w_pad[2, :np_total] = np.concatenate(wobj_cols, axis=1)[0]
    return (ps3,
            jnp.asarray(tbox_pad.reshape(4, R, 128)),
            jnp.asarray(anch_pad.reshape(2, R, 128)),
            jnp.asarray(cls0_pad.reshape(1, R, 128)),
            jnp.asarray(w_pad.reshape(3, R, 128)))


# --------------------------------- forward ----------------------------------- #
def yolo_loss_v7_forward(preds, targets_np, image_size_np):
    bs = preds[0].shape[0]
    nc = preds[0].shape[-1] - 5
    grids = [(int(p.shape[-3]), int(p.shape[-2])) for p in preds]
    anchors_np = np.asarray(ANCHORS, np.float32).reshape(NL, NA, 2)
    tcls_l, tbox_l, idx_l, anch_l = build_targets_np(
        targets_np, grids, image_size_np, anchors_np, G, THRESH)

    zero = jnp.zeros((), jnp.float32)
    lbox, lcls, lobj_corr = zero, zero, zero

    packed = _pack_matched(preds, tcls_l, tbox_l, idx_l, anch_l, nc)
    if packed is not None:
        lbox_s, lcls_s, lobjc_s = matched_loss_call(*packed, nc)
        lbox = lbox_s
        if nc > 1:
            lcls = lcls_s
        lobj_corr = lobjc_s

    # Dense objectness BCE with tobj eliminated: sum_i balance_i/N_i * BCE(x,0)
    # minus the matched correction computed in the matched kernel.
    x2d, w_col, tile_rows = _pack_obj_logits(preds)
    lobj = obj_bce_call(x2d, w_col, tile_rows) - lobj_corr

    lbox = lbox * 0.05
    lobj = lobj * 1.0
    lcls = lcls * 0.125
    loss = (lbox + lobj + lcls) * bs
    return loss, lbox, lobj, lcls


# ----------------------------------- main ------------------------------------ #
if __name__ == "__main__":
    key = jax.random.PRNGKey(0)
    bs = 2
    no = 5 + NUM_CLASSES
    img_h, img_w = 64.0, 64.0
    grid_sizes = [(8, 8), (4, 4), (2, 2)]          # strides 8 / 16 / 32

    keys = jax.random.split(key, 6)
    preds = [jax.random.normal(keys[li], (bs, NA, H, W, no), dtype=jnp.float32)
             for li, (H, W) in enumerate(grid_sizes)]

    # targets: (bs, M, 6) = [image_idx, cls in 1..nc, cx, cy, w, h] in pixel coords
    M = 3
    cxy = np.asarray(jax.random.uniform(keys[3], (bs, M, 2),
                                        minval=8.0, maxval=56.0), np.float32)
    wh = np.tile(np.array([[12., 14.], [24., 28.], [40., 44.]], np.float32)[None],
                 (bs, 1, 1))
    cls = np.asarray(jax.random.randint(keys[4], (bs, M, 1), 1, NUM_CLASSES + 1),
                     np.float32)
    img_idx = np.tile(np.arange(bs, dtype=np.float32).reshape(bs, 1, 1), (1, M, 1))
    targets_np = np.concatenate([img_idx, cls, cxy, wh], axis=2).astype(np.float32)
    image_size_np = np.array([img_h, img_w], np.float32)

    loss, lbox, lobj, lcls = yolo_loss_v7_forward(preds, targets_np, image_size_np)
    jax.block_until_ready(loss)
    print("KERNEL_OK")
</pallas_src>

<mosaic_0001>
module attributes {stable_mosaic.version = 11 : i64} {
  func.func @matched_loss_kernel(%arg0: i32, %arg1: memref<9x8x128xf32, #tpu.memory_space<vmem>>, %arg2: memref<4x8x128xf32, #tpu.memory_space<vmem>>, %arg3: memref<2x8x128xf32, #tpu.memory_space<vmem>>, %arg4: memref<1x8x128xi32, #tpu.memory_space<vmem>>, %arg5: memref<3x8x128xf32, #tpu.memory_space<vmem>>, %arg6: memref<1x8x128xf32, #tpu.memory_space<vmem>>) attributes {dimension_semantics = [#tpu.dimension_semantics<parallel>], iteration_bounds = array<i64: 1>, scalar_prefetch = 0 : i64, scratch_operands = 0 : i64, tpu.core_type = #tpu.core_type<tc>, window_params = [{transform_indices = @transform_0, window_bounds = array<i64: 9, 8, 128>}, {transform_indices = @transform_1, window_bounds = array<i64: 4, 8, 128>}, {transform_indices = @transform_2, window_bounds = array<i64: 2, 8, 128>}, {transform_indices = @transform_3, window_bounds = array<i64: 1, 8, 128>}, {transform_indices = @transform_4, window_bounds = array<i64: 3, 8, 128>}, {transform_indices = @transform_5, window_bounds = array<i64: 1, 8, 128>}]} {
    %c0 = arith.constant 0 : index
    %c0_0 = arith.constant 0 : index
    %c0_1 = arith.constant 0 : index
    %0 = vector.load %arg1[%c0, %c0_0, %c0_1] : memref<9x8x128xf32, #tpu.memory_space<vmem>>, vector<1x8x128xf32>
    %1 = vector.shape_cast %0 : vector<1x8x128xf32> to vector<8x128xf32>
    %2 = arith.negf %1 : vector<8x128xf32>
    %3 = math.exp %2 : vector<8x128xf32>
    %cst = arith.constant 1.000000e+00 : f32
    %4 = vector.broadcast %cst : f32 to vector<8x128xf32>
    %5 = arith.addf %4, %3 : vector<8x128xf32>
    %6 = arith.divf %4, %5 : vector<8x128xf32>
    %cst_2 = arith.constant 3.000000e+00 : f32
    %7 = vector.broadcast %cst_2 : f32 to vector<8x128xf32>
    %8 = arith.mulf %6, %7 : vector<8x128xf32>
    %cst_3 = arith.constant 1.000000e+00 : f32
    %9 = vector.broadcast %cst_3 : f32 to vector<8x128xf32>
    %10 = arith.subf %8, %9 : vector<8x128xf32>
    %c1 = arith.constant 1 : index
    %c0_4 = arith.constant 0 : index
    %c0_5 = arith.constant 0 : index
    %11 = vector.load %arg1[%c1, %c0_4, %c0_5] : memref<9x8x128xf32, #tpu.memory_space<vmem>>, vector<1x8x128xf32>
    %12 = vector.shape_cast %11 : vector<1x8x128xf32> to vector<8x128xf32>
    %13 = arith.negf %12 : vector<8x128xf32>
    %14 = math.exp %13 : vector<8x128xf32>
    %cst_6 = arith.constant 1.000000e+00 : f32
    %15 = vector.broadcast %cst_6 : f32 to vector<8x128xf32>
    %16 = arith.addf %15, %14 : vector<8x128xf32>
    %17 = arith.divf %15, %16 : vector<8x128xf32>
    %cst_7 = arith.constant 3.000000e+00 : f32
    %18 = vector.broadcast %cst_7 : f32 to vector<8x128xf32>
    %19 = arith.mulf %17, %18 : vector<8x128xf32>
    %cst_8 = arith.constant 1.000000e+00 : f32
    %20 = vector.broadcast %cst_8 : f32 to vector<8x128xf32>
    %21 = arith.subf %19, %20 : vector<8x128xf32>
    %c2 = arith.constant 2 : index
    %c0_9 = arith.constant 0 : index
    %c0_10 = arith.constant 0 : index
    %22 = vector.load %arg1[%c2, %c0_9, %c0_10] : memref<9x8x128xf32, #tpu.memory_space<vmem>>, vector<1x8x128xf32>
    %23 = vector.shape_cast %22 : vector<1x8x128xf32> to vector<8x128xf32>
    %24 = arith.negf %23 : vector<8x128xf32>
    %25 = math.exp %24 : vector<8x128xf32>
    %cst_11 = arith.constant 1.000000e+00 : f32
    %26 = vector.broadcast %cst_11 : f32 to vector<8x128xf32>
    %27 = arith.addf %26, %25 : vector<8x128xf32>
    %28 = arith.divf %26, %27 : vector<8x128xf32>
    %cst_12 = arith.constant 2.000000e+00 : f32
    %29 = vector.broadcast %cst_12 : f32 to vector<8x128xf32>
    %30 = arith.mulf %28, %29 : vector<8x128xf32>
    %31 = arith.mulf %30, %30 : vector<8x128xf32>
    %c0_13 = arith.constant 0 : index
    %c0_14 = arith.constant 0 : index
    %c0_15 = arith.constant 0 : index
    %32 = vector.load %arg3[%c0_13, %c0_14, %c0_15] : memref<2x8x128xf32, #tpu.memory_space<vmem>>, vector<1x8x128xf32>
    %33 = vector.shape_cast %32 : vector<1x8x128xf32> to vector<8x128xf32>
    %34 = arith.mulf %31, %33 : vector<8x128xf32>
    %c3 = arith.constant 3 : index
    %c0_16 = arith.constant 0 : index
    %c0_17 = arith.constant 0 : index
    %35 = vector.load %arg1[%c3, %c0_16, %c0_17] : memref<9x8x128xf32, #tpu.memory_space<vmem>>, vector<1x8x128xf32>
    %36 = vector.shape_cast %35 : vector<1x8x128xf32> to vector<8x128xf32>
    %37 = arith.negf %36 : vector<8x128xf32>
    %38 = math.exp %37 : vector<8x128xf32>
    %cst_18 = arith.constant 1.000000e+00 : f32
    %39 = vector.broadcast %cst_18 : f32 to vector<8x128xf32>
    %40 = arith.addf %39, %38 : vector<8x128xf32>
    %41 = arith.divf %39, %40 : vector<8x128xf32>
    %cst_19 = arith.constant 2.000000e+00 : f32
    %42 = vector.broadcast %cst_19 : f32 to vector<8x128xf32>
    %43 = arith.mulf %41, %42 : vector<8x128xf32>
    %44 = arith.mulf %43, %43 : vector<8x128xf32>
    %c1_20 = arith.constant 1 : index
    %c0_21 = arith.constant 0 : index
    %c0_22 = arith.constant 0 : index
    %45 = vector.load %arg3[%c1_20, %c0_21, %c0_22] : memref<2x8x128xf32, #tpu.memory_space<vmem>>, vector<1x8x128xf32>
    %46 = vector.shape_cast %45 : vector<1x8x128xf32> to vector<8x128xf32>
    %47 = arith.mulf %44, %46 : vector<8x128xf32>
    %c0_23 = arith.constant 0 : index
    %c0_24 = arith.constant 0 : index
    %c0_25 = arith.constant 0 : index
    %48 = vector.load %arg2[%c0_23, %c0_24, %c0_25] : memref<4x8x128xf32, #tpu.memory_space<vmem>>, vector<1x8x128xf32>
    %49 = vector.shape_cast %48 : vector<1x8x128xf32> to vector<8x128xf32>
    %c1_26 = arith.constant 1 : index
    %c0_27 = arith.constant 0 : index
    %c0_28 = arith.constant 0 : index
    %50 = vector.load %arg2[%c1_26, %c0_27, %c0_28] : memref<4x8x128xf32, #tpu.memory_space<vmem>>, vector<1x8x128xf32>
    %51 = vector.shape_cast %50 : vector<1x8x128xf32> to vector<8x128xf32>
    %c2_29 = arith.constant 2 : index
    %c0_30 = arith.constant 0 : index
    %c0_31 = arith.constant 0 : index
    %52 = vector.load %arg2[%c2_29, %c0_30, %c0_31] : memref<4x8x128xf32, #tpu.memory_space<vmem>>, vector<1x8x128xf32>
    %53 = vector.shape_cast %52 : vector<1x8x128xf32> to vector<8x128xf32>
    %c3_32 = arith.constant 3 : index
    %c0_33 = arith.constant 0 : index
    %c0_34 = arith.constant 0 : index
    %54 = vector.load %arg2[%c3_32, %c0_33, %c0_34] : memref<4x8x128xf32, #tpu.memory_space<vmem>>, vector<1x8x128xf32>
    %55 = vector.shape_cast %54 : vector<1x8x128xf32> to vector<8x128xf32>
    %cst_35 = arith.constant 5.000000e-01 : f32
    %56 = vector.broadcast %cst_35 : f32 to vector<8x128xf32>
    %57 = arith.mulf %34, %56 : vector<8x128xf32>
    %58 = arith.subf %10, %57 : vector<8x128xf32>
    %cst_36 = arith.constant 5.000000e-01 : f32
    %59 = vector.broadcast %cst_36 : f32 to vector<8x128xf32>
    %60 = arith.mulf %34, %59 : vector<8x128xf32>
    %61 = arith.addf %10, %60 : vector<8x128xf32>
    %cst_37 = arith.constant 5.000000e-01 : f32
    %62 = vector.broadcast %cst_37 : f32 to vector<8x128xf32>
    %63 = arith.mulf %47, %62 : vector<8x128xf32>
    %64 = arith.subf %21, %63 : vector<8x128xf32>
    %cst_38 = arith.constant 5.000000e-01 : f32
    %65 = vector.broadcast %cst_38 : f32 to vector<8x128xf32>
    %66 = arith.mulf %47, %65 : vector<8x128xf32>
    %67 = arith.addf %21, %66 : vector<8x128xf32>
    %cst_39 = arith.constant 5.000000e-01 : f32
    %68 = vector.broadcast %cst_39 : f32 to vector<8x128xf32>
    %69 = arith.mulf %53, %68 : vector<8x128xf32>
    %70 = arith.subf %49, %69 : vector<8x128xf32>
    %cst_40 = arith.constant 5.000000e-01 : f32
    %71 = vector.broadcast %cst_40 : f32 to vector<8x128xf32>
    %72 = arith.mulf %53, %71 : vector<8x128xf32>
    %73 = arith.addf %49, %72 : vector<8x128xf32>
    %cst_41 = arith.constant 5.000000e-01 : f32
    %74 = vector.broadcast %cst_41 : f32 to vector<8x128xf32>
    %75 = arith.mulf %55, %74 : vector<8x128xf32>
    %76 = arith.subf %51, %75 : vector<8x128xf32>
    %cst_42 = arith.constant 5.000000e-01 : f32
    %77 = vector.broadcast %cst_42 : f32 to vector<8x128xf32>
    %78 = arith.mulf %55, %77 : vector<8x128xf32>
    %79 = arith.addf %51, %78 : vector<8x128xf32>
    %80 = arith.minimumf %61, %73 : vector<8x128xf32>
    %81 = arith.maximumf %58, %70 : vector<8x128xf32>
    %82 = arith.subf %80, %81 : vector<8x128xf32>
    %cst_43 = arith.constant 0.000000e+00 : f32
    %83 = vector.broadcast %cst_43 : f32 to vector<8x128xf32>
    %84 = arith.maximumf %82, %83 : vector<8x128xf32>
    %85 = arith.minimumf %67, %79 : vector<8x128xf32>
    %86 = arith.maximumf %64, %76 : vector<8x128xf32>
    %87 = arith.subf %85, %86 : vector<8x128xf32>
    %cst_44 = arith.constant 0.000000e+00 : f32
    %88 = vector.broadcast %cst_44 : f32 to vector<8x128xf32>
    %89 = arith.maximumf %87, %88 : vector<8x128xf32>
    %90 = arith.mulf %84, %89 : vector<8x128xf32>
    %91 = arith.mulf %34, %47 : vector<8x128xf32>
    %92 = arith.mulf %53, %55 : vector<8x128xf32>
    %93 = arith.addf %91, %92 : vector<8x128xf32>
    %94 = arith.subf %93, %90 : vector<8x128xf32>
    %cst_45 = arith.constant 1.000000e-07 : f32
    %95 = vector.broadcast %cst_45 : f32 to vector<8x128xf32>
    %96 = arith.addf %94, %95 : vector<8x128xf32>
    %97 = tpu.reciprocal %96 {approx = true} : vector<8x128xf32> -> vector<8x128xf32>
    %98 = arith.mulf %90, %97 : vector<8x128xf32>
    %99 = arith.maximumf %61, %73 : vector<8x128xf32>
    %100 = arith.minimumf %58, %70 : vector<8x128xf32>
    %101 = arith.subf %99, %100 : vector<8x128xf32>
    %102 = arith.maximumf %67, %79 : vector<8x128xf32>
    %103 = arith.minimumf %64, %76 : vector<8x128xf32>
    %104 = arith.subf %102, %103 : vector<8x128xf32>
    %105 = arith.mulf %101, %101 : vector<8x128xf32>
    %106 = arith.mulf %104, %104 : vector<8x128xf32>
    %107 = arith.addf %105, %106 : vector<8x128xf32>
    %cst_46 = arith.constant 1.000000e-07 : f32
    %108 = vector.broadcast %cst_46 : f32 to vector<8x128xf32>
    %109 = arith.addf %107, %108 : vector<8x128xf32>
    %110 = arith.subf %49, %10 : vector<8x128xf32>
    %111 = arith.mulf %110, %110 : vector<8x128xf32>
    %112 = arith.subf %51, %21 : vector<8x128xf32>
    %113 = arith.mulf %112, %112 : vector<8x128xf32>
    %114 = arith.addf %111, %113 : vector<8x128xf32>
    %cst_47 = arith.constant 1.000000e-07 : f32
    %115 = vector.broadcast %cst_47 : f32 to vector<8x128xf32>
    %116 = arith.maximumf %55, %115 : vector<8x128xf32>
    %117 = tpu.reciprocal %116 {approx = true} : vector<8x128xf32> -> vector<8x128xf32>
    %118 = arith.mulf %53, %117 : vector<8x128xf32>
    %cst_48 = arith.constant 1.000000e-30 : f32
    %119 = vector.broadcast %cst_48 : f32 to vector<8x128xf32>
    %120 = arith.maximumf %118, %119 : vector<8x128xf32>
    %121 = tpu.reciprocal %120 {approx = true} : vector<8x128xf32> -> vector<8x128xf32>
    %cst_49 = arith.constant 1.000000e+00 : f32
    %122 = vector.broadcast %cst_49 : f32 to vector<8x128xf32>
    %123 = arith.addf %118, %122 : vector<8x128xf32>
    %124 = tpu.reciprocal %123 {approx = true} : vector<8x128xf32> -> vector<8x128xf32>
    %cst_50 = arith.constant 2.41421366 : f32
    %125 = vector.broadcast %cst_50 : f32 to vector<8x128xf32>
    %126 = arith.cmpf ogt, %118, %125 : vector<8x128xf32>
    %cst_51 = arith.constant 0.000000e+00 : f32
    %127 = vector.broadcast %cst_51 : f32 to vector<8x128xf32>
    %128 = arith.subf %127, %121 : vector<8x128xf32>
    %cst_52 = arith.constant 0.414213568 : f32
    %129 = vector.broadcast %cst_52 : f32 to vector<8x128xf32>
    %130 = arith.cmpf ogt, %118, %129 : vector<8x128xf32>
    %cst_53 = arith.constant 1.000000e+00 : f32
    %131 = vector.broadcast %cst_53 : f32 to vector<8x128xf32>
    %132 = arith.subf %118, %131 : vector<8x128xf32>
    %133 = arith.mulf %132, %124 : vector<8x128xf32>
    %134 = arith.select %130, %133, %118 : vector<8x128xi1>, vector<8x128xf32>
    %135 = arith.select %126, %128, %134 : vector<8x128xi1>, vector<8x128xf32>
    %cst_54 = arith.constant 2.41421366 : f32
    %136 = vector.broadcast %cst_54 : f32 to vector<8x128xf32>
    %137 = arith.cmpf ogt, %118, %136 : vector<8x128xf32>
    %cst_55 = arith.constant 0.414213568 : f32
    %138 = vector.broadcast %cst_55 : f32 to vector<8x128xf32>
    %139 = arith.cmpf ogt, %118, %138 : vector<8x128xf32>
    %cst_56 = arith.constant 0.785398185 : f32
    %cst_57 = arith.constant 0.000000e+00 : f32
    %140 = vector.broadcast %cst_56 : f32 to vector<8x128xf32>
    %141 = vector.broadcast %cst_57 : f32 to vector<8x128xf32>
    %142 = arith.select %139, %140, %141 : vector<8x128xi1>, vector<8x128xf32>
    %cst_58 = arith.constant 1.57079637 : f32
    %143 = vector.broadcast %cst_58 : f32 to vector<8x128xf32>
    %144 = arith.select %137, %143, %142 : vector<8x128xi1>, vector<8x128xf32>
    %145 = arith.mulf %135, %135 : vector<8x128xf32>
    %cst_59 = arith.constant 0.0805374458 : f32
    %146 = vector.broadcast %cst_59 : f32 to vector<8x128xf32>
    %147 = arith.mulf %146, %145 : vector<8x128xf32>
    %cst_60 = arith.constant 0.138776854 : f32
    %148 = vector.broadcast %cst_60 : f32 to vector<8x128xf32>
    %149 = arith.subf %147, %148 : vector<8x128xf32>
    %150 = arith.mulf %149, %145 : vector<8x128xf32>
    %cst_61 = arith.constant 0.199777111 : f32
    %151 = vector.broadcast %cst_61 : f32 to vector<8x128xf32>
    %152 = arith.addf %150, %151 : vector<8x128xf32>
    %153 = arith.mulf %152, %145 : vector<8x128xf32>
    %cst_62 = arith.constant 0.333329499 : f32
    %154 = vector.broadcast %cst_62 : f32 to vector<8x128xf32>
    %155 = arith.subf %153, %154 : vector<8x128xf32>
    %156 = arith.mulf %155, %145 : vector<8x128xf32>
    %157 = arith.mulf %156, %135 : vector<8x128xf32>
    %158 = arith.addf %157, %135 : vector<8x128xf32>
    %159 = arith.addf %144, %158 : vector<8x128xf32>
    %cst_63 = arith.constant 1.000000e-07 : f32
    %160 = vector.broadcast %cst_63 : f32 to vector<8x128xf32>
    %161 = arith.maximumf %47, %160 : vector<8x128xf32>
    %162 = tpu.reciprocal %161 {approx = true} : vector<8x128xf32> -> vector<8x128xf32>
    %163 = arith.mulf %34, %162 : vector<8x128xf32>
    %cst_64 = arith.constant 1.000000e-30 : f32
    %164 = vector.broadcast %cst_64 : f32 to vector<8x128xf32>
    %165 = arith.maximumf %163, %164 : vector<8x128xf32>
    %166 = tpu.reciprocal %165 {approx = true} : vector<8x128xf32> -> vector<8x128xf32>
    %cst_65 = arith.constant 1.000000e+00 : f32
    %167 = vector.broadcast %cst_65 : f32 to vector<8x128xf32>
    %168 = arith.addf %163, %167 : vector<8x128xf32>
    %169 = tpu.reciprocal %168 {approx = true} : vector<8x128xf32> -> vector<8x128xf32>
    %cst_66 = arith.constant 2.41421366 : f32
    %170 = vector.broadcast %cst_66 : f32 to vector<8x128xf32>
    %171 = arith.cmpf ogt, %163, %170 : vector<8x128xf32>
    %cst_67 = arith.constant 0.000000e+00 : f32
    %172 = vector.broadcast %cst_67 : f32 to vector<8x128xf32>
    %173 = arith.subf %172, %166 : vector<8x128xf32>
    %cst_68 = arith.constant 0.414213568 : f32
    %174 = vector.broadcast %cst_68 : f32 to vector<8x128xf32>
    %175 = arith.cmpf ogt, %163, %174 : vector<8x128xf32>
    %cst_69 = arith.constant 1.000000e+00 : f32
    %176 = vector.broadcast %cst_69 : f32 to vector<8x128xf32>
    %177 = arith.subf %163, %176 : vector<8x128xf32>
    %178 = arith.mulf %177, %169 : vector<8x128xf32>
    %179 = arith.select %175, %178, %163 : vector<8x128xi1>, vector<8x128xf32>
    %180 = arith.select %171, %173, %179 : vector<8x128xi1>, vector<8x128xf32>
    %cst_70 = arith.constant 2.41421366 : f32
    %181 = vector.broadcast %cst_70 : f32 to vector<8x128xf32>
    %182 = arith.cmpf ogt, %163, %181 : vector<8x128xf32>
    %cst_71 = arith.constant 0.414213568 : f32
    %183 = vector.broadcast %cst_71 : f32 to vector<8x128xf32>
    %184 = arith.cmpf ogt, %163, %183 : vector<8x128xf32>
    %cst_72 = arith.constant 0.785398185 : f32
    %cst_73 = arith.constant 0.000000e+00 : f32
    %185 = vector.broadcast %cst_72 : f32 to vector<8x128xf32>
    %186 = vector.broadcast %cst_73 : f32 to vector<8x128xf32>
    %187 = arith.select %184, %185, %186 : vector<8x128xi1>, vector<8x128xf32>
    %cst_74 = arith.constant 1.57079637 : f32
    %188 = vector.broadcast %cst_74 : f32 to vector<8x128xf32>
    %189 = arith.select %182, %188, %187 : vector<8x128xi1>, vector<8x128xf32>
    %190 = arith.mulf %180, %180 : vector<8x128xf32>
    %cst_75 = arith.constant 0.0805374458 : f32
    %191 = vector.broadcast %cst_75 : f32 to vector<8x128xf32>
    %192 = arith.mulf %191, %190 : vector<8x128xf32>
    %cst_76 = arith.constant 0.138776854 : f32
    %193 = vector.broadcast %cst_76 : f32 to vector<8x128xf32>
    %194 = arith.subf %192, %193 : vector<8x128xf32>
    %195 = arith.mulf %194, %190 : vector<8x128xf32>
    %cst_77 = arith.constant 0.199777111 : f32
    %196 = vector.broadcast %cst_77 : f32 to vector<8x128xf32>
    %197 = arith.addf %195, %196 : vector<8x128xf32>
    %198 = arith.mulf %197, %190 : vector<8x128xf32>
    %cst_78 = arith.constant 0.333329499 : f32
    %199 = vector.broadcast %cst_78 : f32 to vector<8x128xf32>
    %200 = arith.subf %198, %199 : vector<8x128xf32>
    %201 = arith.mulf %200, %190 : vector<8x128xf32>
    %202 = arith.mulf %201, %180 : vector<8x128xf32>
    %203 = arith.addf %202, %180 : vector<8x128xf32>
    %204 = arith.addf %189, %203 : vector<8x128xf32>
    %205 = arith.subf %159, %204 : vector<8x128xf32>
    %cst_79 = arith.constant 0.405284733 : f32
    %206 = vector.broadcast %cst_79 : f32 to vector<8x128xf32>
    %207 = arith.mulf %206, %205 : vector<8x128xf32>
    %208 = arith.mulf %207, %205 : vector<8x128xf32>
    %209 = arith.subf %208, %98 : vector<8x128xf32>
    %cst_80 = arith.constant 1.00000012 : f32
    %210 = vector.broadcast %cst_80 : f32 to vector<8x128xf32>
    %211 = arith.addf %209, %210 : vector<8x128xf32>
    %cst_81 = arith.constant 1.000000e-07 : f32
    %212 = vector.broadcast %cst_81 : f32 to vector<8x128xf32>
    %213 = arith.maximumf %211, %212 : vector<8x128xf32>
    %214 = tpu.reciprocal %213 {approx = true} : vector<8x128xf32> -> vector<8x128xf32>
    %215 = arith.mulf %208, %214 : vector<8x128xf32>
    %216 = tpu.reciprocal %109 {approx = true} : vector<8x128xf32> -> vector<8x128xf32>
    %217 = arith.mulf %114, %216 : vector<8x128xf32>
    %218 = arith.mulf %208, %215 : vector<8x128xf32>
    %219 = arith.addf %217, %218 : vector<8x128xf32>
    %220 = arith.subf %98, %219 : vector<8x128xf32>
    %c0_82 = arith.constant 0 : index
    %c0_83 = arith.constant 0 : index
    %c0_84 = arith.constant 0 : index
    %221 = vector.load %arg5[%c0_82, %c0_83, %c0_84] : memref<3x8x128xf32, #tpu.memory_space<vmem>>, vector<1x8x128xf32>
    %222 = vector.shape_cast %221 : vector<1x8x128xf32> to vector<8x128xf32>
    %c1_85 = arith.constant 1 : index
    %c0_86 = arith.constant 0 : index
    %c0_87 = arith.constant 0 : index
    %223 = vector.load %arg5[%c1_85, %c0_86, %c0_87] : memref<3x8x128xf32, #tpu.memory_space<vmem>>, vector<1x8x128xf32>
    %224 = vector.shape_cast %223 : vector<1x8x128xf32> to vector<8x128xf32>
    %c2_88 = arith.constant 2 : index
    %c0_89 = arith.constant 0 : index
    %c0_90 = arith.constant 0 : index
    %225 = vector.load %arg5[%c2_88, %c0_89, %c0_90] : memref<3x8x128xf32, #tpu.memory_space<vmem>>, vector<1x8x128xf32>
    %226 = vector.shape_cast %225 : vector<1x8x128xf32> to vector<8x128xf32>
    %cst_91 = arith.constant 1.000000e+00 : f32
    %227 = vector.broadcast %cst_91 : f32 to vector<8x128xf32>
    %228 = arith.subf %227, %220 : vector<8x128xf32>
    %229 = arith.mulf %222, %228 : vector<8x128xf32>
    %230 = vector.shape_cast %229 : vector<8x128xf32> to vector<1x8x128xf32>
    %cst_92 = arith.constant dense<0.000000e+00> : vector<1xf32>
    %231 = vector.multi_reduction <add>, %230, %cst_92 [1, 2] : vector<1x8x128xf32> to vector<1xf32>
    %232 = vector.shape_cast %231 : vector<1xf32> to vector<1x1x1xf32>
    %233 = vector.extract %232[0, 0, 0] : f32 from vector<1x1x1xf32>
    %c4 = arith.constant 4 : index
    %c0_93 = arith.constant 0 : index
    %c0_94 = arith.constant 0 : index
    %234 = vector.load %arg1[%c4, %c0_93, %c0_94] : memref<9x8x128xf32, #tpu.memory_space<vmem>>, vector<1x8x128xf32>
    %235 = vector.shape_cast %234 : vector<1x8x128xf32> to vector<8x128xf32>
    %236 = arith.mulf %226, %235 : vector<8x128xf32>
    %cst_95 = arith.constant 0.000000e+00 : f32
    %237 = vector.broadcast %cst_95 : f32 to vector<8x128xf32>
    %238 = arith.maximumf %220, %237 : vector<8x128xf32>
    %239 = arith.mulf %236, %238 : vector<8x128xf32>
    %240 = vector.shape_cast %239 : vector<8x128xf32> to vector<1x8x128xf32>
    %cst_96 = arith.constant dense<0.000000e+00> : vector<1xf32>
    %241 = vector.multi_reduction <add>, %240, %cst_96 [1, 2] : vector<1x8x128xf32> to vector<1xf32>
    %242 = vector.shape_cast %241 : vector<1xf32> to vector<1x1x1xf32>
    %243 = vector.extract %242[0, 0, 0] : f32 from vector<1x1x1xf32>
    %c5 = arith.constant 5 : index
    %c0_97 = arith.constant 0 : index
    %c0_98 = arith.constant 0 : index
    %244 = vector.load %arg1[%c5, %c0_97, %c0_98] : memref<9x8x128xf32, #tpu.memory_space<vmem>>, vector<4x8x128xf32>
    %245 = tpu.iota {dimensions = array<i32: 0>} : vector<4x8x128xi32>
    %c0_99 = arith.constant 0 : index
    %c0_100 = arith.constant 0 : index
    %c0_101 = arith.constant 0 : index
    %246 = vector.load %arg4[%c0_99, %c0_100, %c0_101] : memref<1x8x128xi32, #tpu.memory_space<vmem>>, vector<1x8x128xi32>
    %247 = vector.shape_cast %246 : vector<1x8x128xi32> to vector<8x128xi32>
    %248 = vector.shape_cast %247 : vector<8x128xi32> to vector<1x8x128xi32>
    %249 = vector.broadcast %248 : vector<1x8x128xi32> to vector<4x8x128xi32>
    %250 = arith.cmpi eq, %245, %249 : vector<4x8x128xi32>
    %cst_102 = arith.constant 1.000000e+00 : f32
    %cst_103 = arith.constant 0.000000e+00 : f32
    %251 = vector.broadcast %cst_102 : f32 to vector<4x8x128xf32>
    %252 = vector.broadcast %cst_103 : f32 to vector<4x8x128xf32>
    %253 = arith.select %250, %251, %252 : vector<4x8x128xi1>, vector<4x8x128xf32>
    %254 = vector.shape_cast %224 : vector<8x128xf32> to vector<1x8x128xf32>
    %cst_104 = arith.constant 0.000000e+00 : f32
    %255 = vector.broadcast %cst_104 : f32 to vector<4x8x128xf32>
    %256 = arith.maximumf %244, %255 : vector<4x8x128xf32>
    %257 = arith.mulf %244, %253 : vector<4x8x128xf32>
    %258 = arith.subf %256, %257 : vector<4x8x128xf32>
    %259 = math.absf %244 : vector<4x8x128xf32>
    %cst_105 = arith.constant 0.000000e+00 : f32
    %260 = vector.broadcast %cst_105 : f32 to vector<4x8x128xf32>
    %261 = arith.subf %260, %259 : vector<4x8x128xf32>
    %262 = math.exp %261 : vector<4x8x128xf32>
    %cst_106 = arith.constant 1.000000e+00 : f32
    %263 = vector.broadcast %cst_106 : f32 to vector<4x8x128xf32>
    %264 = arith.addf %263, %262 : vector<4x8x128xf32>
    %265 = math.log %264 : vector<4x8x128xf32>
    %266 = arith.addf %258, %265 : vector<4x8x128xf32>
    %267 = vector.broadcast %254 : vector<1x8x128xf32> to vector<4x8x128xf32>
    %268 = arith.mulf %267, %266 : vector<4x8x128xf32>
    %269 = vector.shape_cast %268 : vector<4x8x128xf32> to vector<1x4x8x128xf32>
    %cst_107 = arith.constant dense<0.000000e+00> : vector<1xf32>
    %270 = vector.multi_reduction <add>, %269, %cst_107 [1, 2, 3] : vector<1x4x8x128xf32> to vector<1xf32>
    %271 = vector.shape_cast %270 : vector<1xf32> to vector<1x1x1x1xf32>
    %272 = vector.extract %271[0, 0, 0, 0] : f32 from vector<1x1x1x1xf32>
    %273 = tpu.iota {dimensions = array<i32: 1>} : vector<1x8x128xi32>
    %274 = tpu.iota {dimensions = array<i32: 2>} : vector<1x8x128xi32>
    %c0_i32 = arith.constant 0 : i32
    %275 = vector.broadcast %c0_i32 : i32 to vector<1x8x128xi32>
    %276 = arith.cmpi eq, %273, %275 : vector<1x8x128xi32>
    %c1_i32 = arith.constant 1 : i32
    %277 = vector.broadcast %c1_i32 : i32 to vector<1x8x128xi32>
    %278 = arith.cmpi eq, %273, %277 : vector<1x8x128xi32>
    %c2_i32 = arith.constant 2 : i32
    %279 = vector.broadcast %c2_i32 : i32 to vector<1x8x128xi32>
    %280 = arith.cmpi eq, %273, %279 : vector<1x8x128xi32>
    %cst_108 = arith.constant 0.000000e+00 : f32
    %281 = vector.broadcast %243 : f32 to vector<1x8x128xf32>
    %282 = vector.broadcast %cst_108 : f32 to vector<1x8x128xf32>
    %283 = arith.select %280, %281, %282 : vector<1x8x128xi1>, vector<1x8x128xf32>
    %284 = vector.broadcast %272 : f32 to vector<1x8x128xf32>
    %285 = arith.select %278, %284, %283 : vector<1x8x128xi1>, vector<1x8x128xf32>
    %286 = vector.broadcast %233 : f32 to vector<1x8x128xf32>
    %287 = arith.select %276, %286, %285 : vector<1x8x128xi1>, vector<1x8x128xf32>
    %c0_i32_109 = arith.constant 0 : i32
    %288 = vector.broadcast %c0_i32_109 : i32 to vector<1x8x128xi32>
    %289 = arith.cmpi eq, %274, %288 : vector<1x8x128xi32>
    %cst_110 = arith.constant 0.000000e+00 : f32
    %290 = vector.broadcast %cst_110 : f32 to vector<1x8x128xf32>
    %291 = arith.select %289, %287, %290 : vector<1x8x128xi1>, vector<1x8x128xf32>
    %c0_111 = arith.constant 0 : index
    %c0_112 = arith.constant 0 : index
    %c0_113 = arith.constant 0 : index
    %292 = vector.load %arg6[%c0_111, %c0_112, %c0_113] : memref<1x8x128xf32, #tpu.memory_space<vmem>>, vector<1x8x128xf32>
    tpu.vector_store %arg6[%c0_111, %c0_112, %c0_113], %291 {strides = array<i32>} : memref<1x8x128xf32, #tpu.memory_space<vmem>>, vector<1x8x128xf32>,
    return
  }
  func.func @transform_0(%arg0: i32) -> (i32, i32, i32) {
    %c0_i32 = arith.constant 0 : i32
    %c0_i32_0 = arith.constant 0 : i32
    %c0_i32_1 = arith.constant 0 : i32
    return %c0_i32, %arg0, %c0_i32_0 : i32, i32, i32
  }
  func.func @transform_1(%arg0: i32) -> (i32, i32, i32) {
    %c0_i32 = arith.constant 0 : i32
    %c0_i32_0 = arith.constant 0 : i32
    %c0_i32_1 = arith.constant 0 : i32
    return %c0_i32, %arg0, %c0_i32_0 : i32, i32, i32
  }
  func.func @transform_2(%arg0: i32) -> (i32, i32, i32) {
    %c0_i32 = arith.constant 0 : i32
    %c0_i32_0 = arith.constant 0 : i32
    %c0_i32_1 = arith.constant 0 : i32
    return %c0_i32, %arg0, %c0_i32_0 : i32, i32, i32
  }
  func.func @transform_3(%arg0: i32) -> (i32, i32, i32) {
    %c0_i32 = arith.constant 0 : i32
    %c0_i32_0 = arith.constant 0 : i32
    %c0_i32_1 = arith.constant 0 : i32
    return %c0_i32, %arg0, %c0_i32_0 : i32, i32, i32
  }
  func.func @transform_4(%arg0: i32) -> (i32, i32, i32) {
    %c0_i32 = arith.constant 0 : i32
    %c0_i32_0 = arith.constant 0 : i32
    %c0_i32_1 = arith.constant 0 : i32
    return %c0_i32, %arg0, %c0_i32_0 : i32, i32, i32
  }
  func.func @transform_5(%arg0: i32) -> (i32, i32, i32) {
    %c0_i32 = arith.constant 0 : i32
    %c0_i32_0 = arith.constant 0 : i32
    %c0_i32_1 = arith.constant 0 : i32
    return %arg0, %c0_i32, %c0_i32_0 : i32, i32, i32
  }
}

</mosaic_0001>

<llo_original>
// kernel: tpu_custom_call.1
$region0: #{tpu_custom_call.1}
  #allocation0 [shape = 'u32[]', space=smem, size = 0x4, offset = 0x4, fixed_abs, tag = 'smem constant byte address 0x4 - core index']
  #allocation1 [shape = 'u32[72,128]{1,0:T(1,128)}', space=vmem, size = 0x9000, scoped, tag = 'internal scratch']
  %s0 = inlined_call_operand.hbm [shape: f32[9,8,128], index: 0, kind: input, shape index: {}]
  %s1 = inlined_call_operand.hbm [shape: f32[4,8,128], index: 1, kind: input, shape index: {}]
  %s2 = inlined_call_operand.hbm [shape: f32[2,8,128], index: 2, kind: input, shape index: {}]
  %s3 = inlined_call_operand.hbm [shape: s32[1,8,128], index: 3, kind: input, shape index: {}]
  %s4 = inlined_call_operand.hbm [shape: f32[3,8,128], index: 4, kind: input, shape index: {}]
  %s5 = inlined_call_operand.hbm [shape: f32[1,8,128], index: 5, kind: output, shape index: {}]
  %s6 = sld [smem:[#allocation0]]
  $region50: #{tpu_custom_call.1} parent=0
    _
  %s8 = ssub.s32 1, %s6
  %s9 = scalar_select 0, %s8, %s6
  $region1: #{tpu_custom_call.1} parent=0
    #allocation2 [shape = 'u8[36864]{0}', space=vmem, size = 0x9000, scoped, tag = 'input window, operand 0, single buffered']
    #allocation3 [shape = 's32[1]{0}', space=sflag, size = 0x4, scoped, tag = 'scoped memory for tpu_custom_call.1']
    #allocation4 [shape = 's32[1]{0}', space=sflag, size = 0x4, scoped, tag = 'scoped memory for tpu_custom_call.1']
    #allocation5 [shape = 'u8[16384]{0}', space=vmem, size = 0x4000, scoped, tag = 'input window, operand 1, single buffered']
    #allocation6 [shape = 's32[1]{0}', space=sflag, size = 0x4, scoped, tag = 'scoped memory for tpu_custom_call.1']
    #allocation7 [shape = 'u8[8192]{0}', space=vmem, size = 0x2000, scoped, tag = 'input window, operand 2, single buffered']
    #allocation8 [shape = 'u8[4096]{0}', space=vmem, size = 0x1000, scoped, tag = 'input window, operand 3, single buffered']
    #allocation9 [shape = 's32[1]{0}', space=sflag, size = 0x4, scoped, tag = 'scoped memory for tpu_custom_call.1']
    #allocation10 [shape = 'u8[12288]{0}', space=vmem, size = 0x3000, scoped, tag = 'input window, operand 4, single buffered']
    #allocation11 [shape = 'u8[4096]{0}', space=vmem, size = 0x1000, scoped, tag = 'output window, operand 0, single buffered']
    %10 = vsyncpa [#allocation3], 0
    %11 = vsyncpa [#allocation6], 0
    %12 = vsyncpa [#allocation9], 0
    %13 = vsyncpa [#allocation4], 0
    // Predicated region
    $region2: #{tpu_custom_call.1} parent=1 // pred_check
      _
    $region3: #{tpu_custom_call.1} parent=1 // pred_check_branch
      %15 = sbr.rel (0) target = $region5
    $region4: #{tpu_custom_call.1} parent=1 // pred_region
      %17 = vsyncadd [#allocation3], 0
      %s18 = sshll.u32 %s0, 4
      %s19 = int_to_ptr.hbm [resolvable:$true] %s18
      %s20 = sshll.u32 [#allocation2], 4
      %s21 = int_to_ptr.vmem [resolvable:$true] %s20
      %26 = dma.hbm_to_vmem [thread:$0]  %s19, 1152, %s21, [#allocation3], 128, 128, 8
    $region5: #{tpu_custom_call.1} parent=1 // pred_fallthru
      _
    // Predicated region
    $region6: #{tpu_custom_call.1} parent=1 // pred_check
      _
    $region7: #{tpu_custom_call.1} parent=1 // pred_check_branch
      %28 = sbr.rel (0) target = $region9
    $region8: #{tpu_custom_call.1} parent=1 // pred_region
      %30 = vsyncadd [#allocation6], 0
      %s31 = sshll.u32 %s1, 4
      %s32 = int_to_ptr.hbm [resolvable:$true] %s31
      %s33 = sshll.u32 [#allocation5], 4
      %s34 = int_to_ptr.vmem [resolvable:$true] %s33
      %39 = dma.hbm_to_vmem [thread:$0]  %s32, 512, %s34, [#allocation6], 128, 128, 8
    $region9: #{tpu_custom_call.1} parent=1 // pred_fallthru
      _
    // Predicated region
    $region10: #{tpu_custom_call.1} parent=1 // pred_check
      _
    $region11: #{tpu_custom_call.1} parent=1 // pred_check_branch
      %41 = sbr.rel (0) target = $region13
    $region12: #{tpu_custom_call.1} parent=1 // pred_region
      %43 = vsyncadd [#allocation6], 0
      %s44 = sshll.u32 %s2, 4
      %s45 = int_to_ptr.hbm [resolvable:$true] %s44
      %s46 = sshll.u32 [#allocation7], 4
      %s47 = int_to_ptr.vmem [resolvable:$true] %s46
      %52 = dma.hbm_to_vmem [thread:$0]  %s45, 256, %s47, [#allocation6], 128, 128, 8
    $region13: #{tpu_custom_call.1} parent=1 // pred_fallthru
      _
    // Predicated region
    $region14: #{tpu_custom_call.1} parent=1 // pred_check
      _
    $region15: #{tpu_custom_call.1} parent=1 // pred_check_branch
      %54 = sbr.rel (0) target = $region17
    $region16: #{tpu_custom_call.1} parent=1 // pred_region
      %56 = vsyncadd [#allocation9], 0
      %s58 = sshll.u32 %s3, 4
      %s59 = int_to_ptr.hbm [resolvable:$true] %s58
      %s60 = sshll.u32 [#allocation8], 4
      %s61 = int_to_ptr.vmem [resolvable:$true] %s60
      %63 = dma.hbm_to_vmem [thread:$0]  %s59, 128, %s61, [#allocation9]
    $region17: #{tpu_custom_call.1} parent=1 // pred_fallthru
      _
    // Predicated region
    $region18: #{tpu_custom_call.1} parent=1 // pred_check
      _
    $region19: #{tpu_custom_call.1} parent=1 // pred_check_branch
      %65 = sbr.rel (0) target = $region21
    $region20: #{tpu_custom_call.1} parent=1 // pred_region
      %67 = vsyncadd [#allocation9], 0
      %s68 = sshll.u32 %s4, 4
      %s69 = int_to_ptr.hbm [resolvable:$true] %s68
      %s70 = sshll.u32 [#allocation10], 4
      %s71 = int_to_ptr.vmem [resolvable:$true] %s70
      %76 = dma.hbm_to_vmem [thread:$0]  %s69, 384, %s71, [#allocation9], 128, 128, 8
    $region21: #{tpu_custom_call.1} parent=1 // pred_fallthru
      _
    // Predicated region
    $region22: #{tpu_custom_call.1} parent=1 // pred_check
      _
    $region23: #{tpu_custom_call.1} parent=1 // pred_check_branch
      %78 = sbr.rel (0) target = $region25
    $region24: #{tpu_custom_call.1} parent=1 // pred_region
      %80 = dma.done [#allocation3], 1152
    $region25: #{tpu_custom_call.1} parent=1 // pred_fallthru
      _
    // Predicated region
    $region26: #{tpu_custom_call.1} parent=1 // pred_check
      _
    $region27: #{tpu_custom_call.1} parent=1 // pred_check_branch
      %82 = sbr.rel (0) target = $region29
    $region28: #{tpu_custom_call.1} parent=1 // pred_region
      %84 = dma.done [#allocation6], 512
    $region29: #{tpu_custom_call.1} parent=1 // pred_fallthru
      _
    // Predicated region
    $region30: #{tpu_custom_call.1} parent=1 // pred_check
      _
    $region31: #{tpu_custom_call.1} parent=1 // pred_check_branch
      %86 = sbr.rel (0) target = $region33
    $region32: #{tpu_custom_call.1} parent=1 // pred_region
      %88 = dma.done [#allocation6], 256
    $region33: #{tpu_custom_call.1} parent=1 // pred_fallthru
      _
    // Predicated region
    $region34: #{tpu_custom_call.1} parent=1 // pred_check
      _
    $region35: #{tpu_custom_call.1} parent=1 // pred_check_branch
      %90 = sbr.rel (0) target = $region37
    $region36: #{tpu_custom_call.1} parent=1 // pred_region
      %92 = dma.done [#allocation9], 128
    $region37: #{tpu_custom_call.1} parent=1 // pred_fallthru
      _
    // Predicated region
    $region38: #{tpu_custom_call.1} parent=1 // pred_check
      _
    $region39: #{tpu_custom_call.1} parent=1 // pred_check_branch
      %94 = sbr.rel (0) target = $region41
    $region40: #{tpu_custom_call.1} parent=1 // pred_region
      %96 = dma.done [#allocation9], 384
    $region41: #{tpu_custom_call.1} parent=1 // pred_fallthru
      _
    %v97 = vld [vmem:[#allocation2] sm:$0xff]
    %v98 = vxor.u32 %v97, 2147483648
    %v99 = vmul.f32 %v98, 1.442695
    %v100 = vpow.pop %v99
    %v101 = vadd.f32 %v100, 1.0
    %v102 = vrcp.pop %v101
    %v103 = vmul.f32 %v101, %v102
    %v104 = vsub.f32 1.0, %v103
    %v105 = vmul.f32 %v102, %v104
    %v106 = vadd.f32 %v102, %v105
    %vm107 = vweird.f32 %v101
    %vm108 = vweird.f32 %v102
    %vm109 = vmor %vm107, %vm108
    %v110 = vsel %vm109, %v102, %v106
    %v111 = vand.u32 2147483647, %v101
    %vm112 = vcmp.eq.f32.partialorder %v111, 8.507059e+37
    %v113 = vand.u32 %v101, 2147483648
    %v114 = vor.u32 1.1754944e-38, %v113
    %v115 = vsel %vm112, %v114, %v110
    %v116 = vmul.f32 1.0, %v115
    %v117 = vmul.f32 %v116, 3.0
    %v118 = vsub.f32 %v117, 1.0
    %s119 = scalar_lea.vmem [#allocation2], 8
    %v120 = vld [vmem:[%s119] sm:$0xff]
    %v121 = vxor.u32 %v120, 2147483648
    %v122 = vmul.f32 %v121, 1.442695
    %v123 = vpow.pop %v122
    %v124 = vadd.f32 %v123, 1.0
    %v125 = vrcp.pop %v124
    %v126 = vmul.f32 %v124, %v125
    %v127 = vsub.f32 1.0, %v126
    %v128 = vmul.f32 %v125, %v127
    %v129 = vadd.f32 %v125, %v128
    %vm130 = vweird.f32 %v124
    %vm131 = vweird.f32 %v125
    %vm132 = vmor %vm130, %vm131
    %v133 = vsel %vm132, %v125, %v129
    %v134 = vand.u32 2147483647, %v124
    %vm135 = vcmp.eq.f32.partialorder %v134, 8.507059e+37
    %v136 = vand.u32 %v124, 2147483648
    %v137 = vor.u32 1.1754944e-38, %v136
    %v138 = vsel %vm135, %v137, %v133
    %v139 = vmul.f32 1.0, %v138
    %v140 = vmul.f32 %v139, 3.0
    %v141 = vsub.f32 %v140, 1.0
    %s142 = scalar_lea.vmem [#allocation2], 16
    %v143 = vld [vmem:[%s142] sm:$0xff]
    %v144 = vxor.u32 %v143, 2147483648
    %v145 = vmul.f32 %v144, 1.442695
    %v146 = vpow.pop %v145
    %v147 = vadd.f32 %v146, 1.0
    %v148 = vrcp.pop %v147
    %v149 = vmul.f32 %v147, %v148
    %v150 = vsub.f32 1.0, %v149
    %v151 = vmul.f32 %v148, %v150
    %v152 = vadd.f32 %v148, %v151
    %vm153 = vweird.f32 %v147
    %vm154 = vweird.f32 %v148
    %vm155 = vmor %vm153, %vm154
    %v156 = vsel %vm155, %v148, %v152
    %v157 = vand.u32 2147483647, %v147
    %vm158 = vcmp.eq.f32.partialorder %v157, 8.507059e+37
    %v159 = vand.u32 %v147, 2147483648
    %v160 = vor.u32 1.1754944e-38, %v159
    %v161 = vsel %vm158, %v160, %v156
    %v162 = vmul.f32 1.0, %v161
    %v163 = vmul.f32 %v162, 2.0
    %v164 = vmul.f32 %v163, %v163
    %v165 = vld [vmem:[#allocation7] sm:$0xff]
    %v166 = vmul.f32 %v164, %v165
    %s167 = scalar_lea.vmem [#allocation2], 24
    %v168 = vld [vmem:[%s167] sm:$0xff]
    %v169 = vxor.u32 %v168, 2147483648
    %v170 = vmul.f32 %v169, 1.442695
    %v171 = vpow.pop %v170
    %v172 = vadd.f32 %v171, 1.0
    %v173 = vrcp.pop %v172
    %v174 = vmul.f32 %v172, %v173
    %v175 = vsub.f32 1.0, %v174
    %v176 = vmul.f32 %v173, %v175
    %v177 = vadd.f32 %v173, %v176
    %vm178 = vweird.f32 %v172
    %vm179 = vweird.f32 %v173
    %vm180 = vmor %vm178, %vm179
    %v181 = vsel %vm180, %v173, %v177
    %v182 = vand.u32 2147483647, %v172
    %vm183 = vcmp.eq.f32.partialorder %v182, 8.507059e+37
    %v184 = vand.u32 %v172, 2147483648
    %v185 = vor.u32 1.1754944e-38, %v184
    %v186 = vsel %vm183, %v185, %v181
    %v187 = vmul.f32 1.0, %v186
    %v188 = vmul.f32 %v187, 2.0
    %v189 = vmul.f32 %v188, %v188
    %s190 = scalar_lea.vmem [#allocation7], 8
    %v191 = vld [vmem:[%s190] sm:$0xff]
    %v192 = vmul.f32 %v189, %v191
    %v193 = vld [vmem:[#allocation5] sm:$0xff]
    %s194 = scalar_lea.vmem [#allocation5], 8
    %v195 = vld [vmem:[%s194] sm:$0xff]
    %s196 = scalar_lea.vmem [#allocation5], 16
    %v197 = vld [vmem:[%s196] sm:$0xff]
    %s198 = scalar_lea.vmem [#allocation5], 24
    %v199 = vld [vmem:[%s198] sm:$0xff]
    %v200 = vmul.f32 %v166, 0.5
    %v201 = vsub.f32 %v118, %v200
    %v202 = vadd.f32 %v118, %v200
    %v203 = vmul.f32 %v192, 0.5
    %v204 = vsub.f32 %v141, %v203
    %v205 = vadd.f32 %v141, %v203
    %v206 = vmul.f32 %v197, 0.5
    %v207 = vsub.f32 %v193, %v206
    %v208 = vadd.f32 %v193, %v206
    %v209 = vmul.f32 %v199, 0.5
    %v210 = vsub.f32 %v195, %v209
    %v211 = vadd.f32 %v195, %v209
    %v212 = vmin.f32 %v202, %v208
    %v213 = vmax.f32 %v201, %v207
    %v214 = vsub.f32 %v212, %v213
    %v215 = vmax.f32 %v214, 0.0
    %v216 = vmin.f32 %v205, %v211
    %v217 = vmax.f32 %v204, %v210
    %v218 = vsub.f32 %v216, %v217
    %v219 = vmax.f32 %v218, 0.0
    %v220 = vmul.f32 %v215, %v219
    %v221 = vmul.f32 %v166, %v192
    %v222 = vmul.f32 %v197, %v199
    %v223 = vadd.f32 %v221, %v222
    %v224 = vsub.f32 %v223, %v220
    %v225 = vadd.f32 %v224, 1e-07
    %v226 = vrcp.pop %v225
    %v227 = vmul.f32 %v220, %v226
    %v228 = vmax.f32 %v202, %v208
    %v229 = vmin.f32 %v201, %v207
    %v230 = vsub.f32 %v228, %v229
    %v231 = vmax.f32 %v205, %v211
    %v232 = vmin.f32 %v204, %v210
    %v233 = vsub.f32 %v231, %v232
    %v234 = vmul.f32 %v230, %v230
    %v235 = vmul.f32 %v233, %v233
    %v236 = vadd.f32 %v234, %v235
    %v237 = vadd.f32 %v236, 1e-07
    %v238 = vsub.f32 %v193, %v118
    %v239 = vmul.f32 %v238, %v238
    %v240 = vsub.f32 %v195, %v141
    %v241 = vmul.f32 %v240, %v240
    %v242 = vadd.f32 %v239, %v241
    %v243 = vmax.f32 %v199, 1e-07
    %v244 = vrcp.pop %v243
    %v245 = vmul.f32 %v197, %v244
    %v246 = vmax.f32 %v245, 1e-30
    %v247 = vrcp.pop %v246
    %v248 = vadd.f32 %v245, 1.0
    %v249 = vrcp.pop %v248
    %vm250 = vcmp.gt.f32.partialorder %v245, 2.4142137
    %v251 = vsub.f32 0.0, %v247
    %vm252 = vcmp.gt.f32.partialorder %v245, 0.41421357
    %v253 = vsub.f32 %v245, 1.0
    %v254 = vmul.f32 %v253, %v249
    %v255 = vsel %vm252, %v254, %v245
    %v256 = vsel %vm250, %v251, %v255
    %v257 = vsel %vm252, 0.7853982, 0.0
    %v258 = vsel %vm250, 1.5707964, %v257
    %v259 = vmul.f32 %v256, %v256
    %v260 = vmul.f32 %v259, 0.080537446
    %v261 = vsub.f32 %v260, 0.13877685
    %v262 = vmul.f32 %v261, %v259
    %v263 = vadd.f32 %v262, 0.19977711
    %v264 = vmul.f32 %v263, %v259
    %v265 = vsub.f32 %v264, 0.3333295
    %v266 = vmul.f32 %v265, %v259
    %v267 = vmul.f32 %v266, %v256
    %v268 = vadd.f32 %v267, %v256
    %v269 = vadd.f32 %v258, %v268
    %v270 = vmax.f32 %v192, 1e-07
    %v271 = vrcp.pop %v270
    %v272 = vmul.f32 %v166, %v271
    %v273 = vmax.f32 %v272, 1e-30
    %v274 = vrcp.pop %v273
    %v275 = vadd.f32 %v272, 1.0
    %v276 = vrcp.pop %v275
    %vm277 = vcmp.gt.f32.partialorder %v272, 2.4142137
    %v278 = vsub.f32 0.0, %v274
    %vm279 = vcmp.gt.f32.partialorder %v272, 0.41421357
    %v280 = vsub.f32 %v272, 1.0
    %v281 = vmul.f32 %v280, %v276
    %v282 = vsel %vm279, %v281, %v272
    %v283 = vsel %vm277, %v278, %v282
    %v284 = vsel %vm279, 0.7853982, 0.0
    %v285 = vsel %vm277, 1.5707964, %v284
    %v286 = vmul.f32 %v283, %v283
    %v287 = vmul.f32 %v286, 0.080537446
    %v288 = vsub.f32 %v287, 0.13877685
    %v289 = vmul.f32 %v288, %v286
    %v290 = vadd.f32 %v289, 0.19977711
    %v291 = vmul.f32 %v290, %v286
    %v292 = vsub.f32 %v291, 0.3333295
    %v293 = vmul.f32 %v292, %v286
    %v294 = vmul.f32 %v293, %v283
    %v295 = vadd.f32 %v294, %v283
    %v296 = vadd.f32 %v285, %v295
    %v297 = vsub.f32 %v269, %v296
    %v298 = vmul.f32 %v297, 0.40528473
    %v299 = vmul.f32 %v298, %v297
    %v300 = vsub.f32 %v299, %v227
    %v301 = vadd.f32 %v300, 1.0000001
    %v302 = vmax.f32 %v301, 1e-07
    %v303 = vrcp.pop %v302
    %v304 = vmul.f32 %v299, %v303
    %v305 = vrcp.pop %v237
    %v306 = vmul.f32 %v242, %v305
    %v307 = vmul.f32 %v299, %v304
    %v308 = vadd.f32 %v306, %v307
    %v309 = vsub.f32 %v227, %v308
    %v310 = vld [vmem:[#allocation10] sm:$0xff]
    %s311 = scalar_lea.vmem [#allocation10], 8
    %v312 = vld [vmem:[%s311] sm:$0xff]
    %s313 = scalar_lea.vmem [#allocation10], 16
    %v314 = vld [vmem:[%s313] sm:$0xff]
    %v315 = vsub.f32 1.0, %v309
    %v316 = vmul.f32 %v310, %v315
    %317 = vadd.xlane.f32.xlu0 %v316
    %v318 = vpop.xlane.xlu0 %317
    %v319 = vrot.slane %v318, 4
    %v320 = vadd.f32 %v318, %v319
    %v321 = vrot.slane %v320, 2
    %v322 = vadd.f32 %v320, %v321
    %v323 = vrot.slane %v322, 1
    %v324 = vadd.f32 %v322, %v323
    %s325 = vtos %v324
    %s326 = scalar_lea.vmem [#allocation2], 32
    %v327 = vld [vmem:[%s326] sm:$0xff]
    %v328 = vmul.f32 %v314, %v327
    %v329 = vmax.f32 %v309, 0.0
    %v330 = vmul.f32 %v328, %v329
    %331 = vadd.xlane.f32.xlu0 %v330
    %v332 = vpop.xlane.xlu0 %331
    %v333 = vrot.slane %v332, 4
    %v334 = vadd.f32 %v332, %v333
    %v335 = vrot.slane %v334, 2
    %v336 = vadd.f32 %v334, %v335
    %v337 = vrot.slane %v336, 1
    %v338 = vadd.f32 %v336, %v337
    %s339 = vtos %v338
    %s340 = scalar_lea.vmem [#allocation2], 40
    %v341 = vld [vmem:[%s340] sm:$0xff]
    %v342 = vld [vmem:[%s340 + $0x8] sm:$0xff]
    %v343 = vld [vmem:[%s340 + $0x10] sm:$0xff]
    %v344 = vld [vmem:[%s340 + $0x18] sm:$0xff]
    %v345 = vld [vmem:[#allocation8] sm:$0xff]
    %vm346 = vcmp.eq.s32.totalorder %v345, 0
    %vm347 = vcmp.eq.s32.totalorder %v345, 1
    %vm348 = vcmp.eq.s32.totalorder %v345, 2
    %vm349 = vcmp.eq.s32.totalorder %v345, 3
    %v350 = vsel %vm346, 1.0, 0.0
    %v351 = vsel %vm347, 1.0, 0.0
    %v352 = vsel %vm348, 1.0, 0.0
    %v353 = vsel %vm349, 1.0, 0.0
    %v354 = vmax.f32 %v341, 0.0
    %v355 = vmax.f32 %v342, 0.0
    %v356 = vmax.f32 %v343, 0.0
    %v357 = vmax.f32 %v344, 0.0
    %v358 = vmul.f32 %v341, %v350
    %v359 = vmul.f32 %v342, %v351
    %v360 = vmul.f32 %v343, %v352
    %v361 = vmul.f32 %v344, %v353
    %v362 = vsub.f32 %v354, %v358
    %v363 = vsub.f32 %v355, %v359
    %v364 = vsub.f32 %v356, %v360
    %v365 = vsub.f32 %v357, %v361
    %v366 = vand.u32 2147483647, %v341
    %v367 = vand.u32 2147483647, %v342
    %v368 = vand.u32 2147483647, %v343
    %v369 = vand.u32 2147483647, %v344
    %v370 = vsub.f32 0.0, %v366
    %v371 = vsub.f32 0.0, %v367
    %v372 = vsub.f32 0.0, %v368
    %v373 = vsub.f32 0.0, %v369
    %v374 = vmul.f32 %v370, 1.442695
    %v375 = vpow.pop %v374
    %v376 = vmul.f32 %v371, 1.442695
    %v377 = vpow.pop %v376
    %v378 = vmul.f32 %v372, 1.442695
    %v379 = vpow.pop %v378
    %v380 = vmul.f32 %v373, 1.442695
    %v381 = vpow.pop %v380
    %v382 = vadd.f32 %v375, 1.0
    %v383 = vadd.f32 %v377, 1.0
    %v384 = vadd.f32 %v379, 1.0
    %v385 = vadd.f32 %v381, 1.0
    %v386 = vlog2.pop %v382
    %v387 = vmul.f32 %v386, 0.6931472
    %v388 = vlog2.pop %v383
    %v389 = vmul.f32 %v388, 0.6931472
    %v390 = vlog2.pop %v384
    %v391 = vmul.f32 %v390, 0.6931472
    %v392 = vlog2.pop %v385
    %v393 = vmul.f32 %v392, 0.6931472
    %v394 = vadd.f32 %v362, %v387
    %v395 = vadd.f32 %v363, %v389
    %v396 = vadd.f32 %v364, %v391
    %v397 = vadd.f32 %v365, %v393
    %v398 = vmul.f32 %v312, %v394
    %v399 = vmul.f32 %v312, %v395
    %v400 = vmul.f32 %v312, %v396
    %v401 = vmul.f32 %v312, %v397
    %v402 = vadd.f32 %v398, %v399
    %v403 = vadd.f32 %v402, %v400
    %v404 = vadd.f32 %v403, %v401
    %405 = vadd.xlane.f32.xlu0 %v404
    %v406 = vpop.xlane.xlu0 %405
    %v407 = vrot.slane %v406, 4
    %v408 = vadd.f32 %v406, %v407
    %v409 = vrot.slane %v408, 2
    %v410 = vadd.f32 %v408, %v409
    %v411 = vrot.slane %v410, 1
    %v412 = vadd.f32 %v410, %v411
    %s413 = vtos %v412
    %v414 = vlaneseq
    %v415 = vshrl.u32 %v414, 7
    %v416 = vlaneseq
    %v417 = vand.u32 %v416, 127
    %vm418 = vcmp.eq.s32.totalorder %v415, 0
    %vm419 = vcmp.eq.s32.totalorder %v415, 1
    %vm420 = vcmp.eq.s32.totalorder %v415, 2
    %v421 = vstv %s339
    %v422 = vsel %vm420, %v421, 0.0
    %v423 = vstv %s413
    %v424 = vsel %vm419, %v423, %v422
    %v425 = vstv %s325
    %v426 = vsel %vm418, %v425, %v424
    %vm427 = vcmp.eq.s32.totalorder %v417, 0
    %v428 = vsel %vm427, %v426, 0.0
    %429 = vst [vmem:[#allocation11] sm:$0xff] %v428
    // Predicated region
    $region42: #{tpu_custom_call.1} parent=1 // pred_check
      _
    $region43: #{tpu_custom_call.1} parent=1 // pred_check_branch
      %431 = sbr.rel (0) target = $region45
    $region44: #{tpu_custom_call.1} parent=1 // pred_region
      %433 = vsyncadd [#allocation4], 0
      %s435 = sshll.u32 [#allocation11], 4
      %s436 = int_to_ptr.vmem [resolvable:$true] %s435
      %s437 = sshll.u32 %s5, 4
      %s438 = int_to_ptr.hbm [resolvable:$true] %s437
      %440 = dma.vmem_to_hbm [thread:$0]  %s436, 128, %s438, [#allocation4]
    $region45: #{tpu_custom_call.1} parent=1 // pred_fallthru
      _
    // Predicated region
    $region46: #{tpu_custom_call.1} parent=1 // pred_check
      _
    $region47: #{tpu_custom_call.1} parent=1 // pred_check_branch
      %442 = sbr.rel (0) target = $region49
    $region48: #{tpu_custom_call.1} parent=1 // pred_region
      %444 = dma.done [#allocation4], 128
    $region49: #{tpu_custom_call.1} parent=1 // pred_fallthru
      _
    %445 = vsyncpa [#allocation3], 1
    %446 = vsyncpa [#allocation6], 1
    %447 = vsyncpa [#allocation9], 1
    %448 = vsyncpa [#allocation4], 1

</llo_original>
